<compile_context>
chip_gen: v7x
topology: tpu7x:2x2x1
jax: 0.10.0
libtpu: 0.0.40
codegen_flags: <defaults>
</compile_context>

<pallas_src>
import jax
import jax.numpy as jnp
from jax.experimental import pallas as pl
from jax.experimental.pallas import tpu as pltpu


def ner_kernel(idx_ref, w_ref, b_ref, out_ref):
    # idx_ref: (K, 1, TN) int32   context-window indices for this batch tile
    # w_ref  : (Cp, K*V)          folded weight (bf16 or f32)
    # b_ref  : (Cp, 1)  f32       bias (rows >= C are zero padding)
    # out_ref: (Cp, TN) f32       lane-dense (transposed) output tile
    K, _, TN = idx_ref.shape
    Cp, KV = w_ref.shape
    V = KV // K

    # One-hot built in-register: oh[k, v, n] = (idx[k, n] == v).
    # int32 compare (v5e-safe); only the 0/1 result is cast to the MXU dtype.
    v_iota = jax.lax.broadcasted_iota(jnp.int32, (K, V, TN), 1)
    oh = (v_iota == idx_ref[...]).astype(w_ref.dtype)        # (K, V, TN)
    # V is a multiple of 8, so this leading-dim merge is layout-preserving.
    oh = oh.reshape(KV, TN)                                  # (K*V, TN)

    # Single MXU pass with f32 accumulation: (Cp, K*V) @ (K*V, TN) -> (Cp, TN)
    out = jnp.dot(w_ref[...], oh, preferred_element_type=jnp.float32)
    out_ref[...] = out + b_ref[...]


def fold_ner_params(table, w_flat, bias, *, weight_dtype=jnp.bfloat16):
    """Fold the embedding table into the linear weight.  Call ONCE and reuse.

    table : (V, E)      embedding table
    w_flat: (K*E, C)    linear weight, transposed (= torch linear.weight.T)
    bias  : (C,)
    Returns (w_fold, b_col) with C zero-padded up to a multiple of 8 (Cp):
      w_fold: (Cp, K*V) in weight_dtype, b_col: (Cp, 1) f32.
    """
    V, E = table.shape
    KE, C = w_flat.shape
    K = KE // E
    assert K * E == KE
    c_pad = ((C + 7) // 8) * 8

    w3 = w_flat.reshape(K, E, C)                                     # (K, E, C)
    w_fold = jnp.einsum('ve,kec->ckv', table.astype(jnp.float32),
                        w3.astype(jnp.float32)).reshape(C, K * V)    # (C, K*V)
    b_col = bias.astype(jnp.float32)
    if c_pad != C:
        w_fold = jnp.pad(w_fold, ((0, c_pad - C), (0, 0)))
        b_col = jnp.pad(b_col, (0, c_pad - C))
    b_col = b_col.reshape(c_pad, 1)
    return w_fold.astype(weight_dtype), b_col


def ner_forward(x_idx, w_fold, b_col, n_class, *, tile_n=1024):
    """x_idx: (N, K) int indices; (w_fold, b_col) from fold_ner_params.
    Returns (N, n_class) f32, matching emb(x).flatten(1,2) @ W + b."""
    N, K = x_idx.shape
    Cp, KV = w_fold.shape
    assert b_col.shape == (Cp, 1)
    assert tile_n % 128 == 0

    # Batch tiling / padding (pad rows use index 0; sliced off at the end).
    n_up128 = pl.cdiv(N, 128) * 128
    tn = min(tile_n, n_up128)                 # multiple of 128
    n_pad = pl.cdiv(N, tn) * tn
    idx = x_idx.astype(jnp.int32)
    if n_pad != N:
        idx = jnp.pad(idx, ((0, n_pad - N), (0, 0)))
    idx_t = idx.T.reshape(K, 1, n_pad)        # batch on the 128-lane axis

    grid = (n_pad // tn,)
    wbytes = jnp.dtype(w_fold.dtype).itemsize
    cost = pl.CostEstimate(
        flops=2 * n_pad * KV * Cp,
        transcendentals=0,
        bytes_accessed=(n_pad * K * 4 + n_pad * Cp * 4
                        + Cp * KV * wbytes + Cp * 4))

    out_t = pl.pallas_call(
        ner_kernel,
        out_shape=jax.ShapeDtypeStruct((Cp, n_pad), jnp.float32),
        grid=grid,
        in_specs=[
            pl.BlockSpec((K, 1, tn), lambda i: (0, 0, i)),   # indices tile
            pl.BlockSpec((Cp, KV), lambda i: (0, 0)),        # resident weight
            pl.BlockSpec((Cp, 1), lambda i: (0, 0)),         # resident bias
        ],
        out_specs=pl.BlockSpec((Cp, tn), lambda i: (0, i)),
        compiler_params=pltpu.CompilerParams(
            dimension_semantics=("parallel",)),
        cost_estimate=cost,
    )(idx_t, w_fold, b_col)

    # Slice valid rows/cols BEFORE transposing back to (N, C).
    # TODO(synk): if downstream can consume the lane-dense (C, N) layout,
    # return out_t[:n_class, :N] directly and drop this transpose.
    return out_t[:n_class, :N].T


if __name__ == "__main__":
    # Small config consistent with the module: vocab_size=32, emb_size=50,
    # n_class=7, context window K=5, batch N=512; tile_n=128 -> grid=(4,).
    vocab_size, emb_size, n_class = 32, 50, 7
    N, K = 512, 5

    key = jax.random.PRNGKey(0)
    k_emb, k_w, k_b, k_x = jax.random.split(key, 4)

    # Synthetic params mirroring nn.Embedding ~ N(0,1) and nn.Linear ~ U(+-1/sqrt(fan_in)).
    table = jax.random.normal(k_emb, (vocab_size, emb_size), dtype=jnp.float32)
    bound = 1.0 / jnp.sqrt(K * emb_size)
    w_flat = jax.random.uniform(k_w, (K * emb_size, n_class),
                                minval=-bound, maxval=bound,
                                dtype=jnp.float32)  # = linear.weight.T
    bias = jax.random.uniform(k_b, (n_class,), minval=-bound, maxval=bound,
                              dtype=jnp.float32)
    x_idx = jax.random.randint(k_x, (N, K), 0, vocab_size, dtype=jnp.int32)

    # Pure-JAX reference of the PyTorch forward: emb(x) -> flatten(1,2) -> linear.
    ref = table[x_idx].reshape(N, K * emb_size) @ w_flat + bias

    # f32 weights: tight numerical check.
    wf32, bf32 = fold_ner_params(table, w_flat, bias, weight_dtype=jnp.float32)
    out_f32 = jax.block_until_ready(
        ner_forward(x_idx, wf32, bf32, n_class, tile_n=128))
    assert out_f32.shape == (N, n_class)
    assert jnp.allclose(out_f32, ref, atol=1e-4, rtol=1e-4), (
        f"f32 max abs err = {jnp.max(jnp.abs(out_f32 - ref))}")

    # bf16 weights (default fast path): ~1e-3 abs error from bf16 folded weights.
    wbf16, bbf16 = fold_ner_params(table, w_flat, bias)   # bf16 default
    out_bf16 = jax.block_until_ready(
        ner_forward(x_idx, wbf16, bbf16, n_class, tile_n=128))
    assert out_bf16.shape == (N, n_class)
    assert jnp.allclose(out_bf16, ref, atol=2e-2, rtol=2e-2), (
        f"bf16 max abs err = {jnp.max(jnp.abs(out_bf16 - ref))}")

    print("KERNEL_OK")
</pallas_src>

<mosaic_0001>
module attributes {stable_mosaic.version = 11 : i64} {
  func.func @ner_kernel(%arg0: i32, %arg1: memref<5x1x128xi32, #tpu.memory_space<vmem>>, %arg2: memref<8x160xf32, #tpu.memory_space<vmem>>, %arg3: memref<8x1xf32, #tpu.memory_space<vmem>>, %arg4: memref<8x128xf32, #tpu.memory_space<vmem>>) attributes {dimension_semantics = [#tpu.dimension_semantics<parallel>], iteration_bounds = array<i64: 4>, scalar_prefetch = 0 : i64, scratch_operands = 0 : i64, tpu.core_type = #tpu.core_type<tc>, window_params = [{transform_indices = @transform_0, window_bounds = array<i64: 5, 1, 128>}, {pipeline_mode = #tpu.pipeline_mode<synchronous>, transform_indices = @transform_1, window_bounds = array<i64: 8, 160>}, {pipeline_mode = #tpu.pipeline_mode<synchronous>, transform_indices = @transform_2, window_bounds = array<i64: 8, 1>}, {transform_indices = @transform_3, window_bounds = array<i64: 8, 128>}]} {
    %0 = tpu.iota {dimensions = array<i32: 1>} : vector<5x32x128xi32>
    %c0 = arith.constant 0 : index
    %c0_0 = arith.constant 0 : index
    %c0_1 = arith.constant 0 : index
    %1 = vector.load %arg1[%c0, %c0_0, %c0_1] : memref<5x1x128xi32, #tpu.memory_space<vmem>>, vector<5x1x128xi32>
    %2 = vector.broadcast %1 : vector<5x1x128xi32> to vector<5x32x128xi32>
    %3 = arith.cmpi eq, %0, %2 : vector<5x32x128xi32>
    %4 = arith.extui %3 : vector<5x32x128xi1> to vector<5x32x128xi32>
    %5 = arith.sitofp %4 : vector<5x32x128xi32> to vector<5x32x128xf32>
    %6 = vector.shape_cast %5 : vector<5x32x128xf32> to vector<160x128xf32>
    %c0_2 = arith.constant 0 : index
    %c0_3 = arith.constant 0 : index
    %7 = vector.load %arg2[%c0_2, %c0_3] : memref<8x160xf32, #tpu.memory_space<vmem>>, vector<8x160xf32>
    %cst = arith.constant dense<0.000000e+00> : vector<8x128xf32>
    %8 = tpu.matmul %7, %6, %cst {dimension_numbers = #tpu.dot_dimension_numbers<[1], [0], [0], [1], [0, 0, 1, 1], [], []>} : vector<8x160xf32>, vector<160x128xf32>, vector<8x128xf32> -> vector<8x128xf32>
    %c0_4 = arith.constant 0 : index
    %c0_5 = arith.constant 0 : index
    %9 = vector.load %arg3[%c0_4, %c0_5] : memref<8x1xf32, #tpu.memory_space<vmem>>, vector<8x1xf32>
    %10 = vector.broadcast %9 : vector<8x1xf32> to vector<8x128xf32>
    %11 = arith.addf %8, %10 : vector<8x128xf32>
    %c0_6 = arith.constant 0 : index
    %c0_7 = arith.constant 0 : index
    %12 = vector.load %arg4[%c0_6, %c0_7] : memref<8x128xf32, #tpu.memory_space<vmem>>, vector<8x128xf32>
    tpu.vector_store %arg4[%c0_6, %c0_7], %11 {strides = array<i32>} : memref<8x128xf32, #tpu.memory_space<vmem>>, vector<8x128xf32>,
    return
  }
  func.func @transform_0(%arg0: i32) -> (i32, i32, i32) {
    %c0_i32 = arith.constant 0 : i32
    %c0_i32_0 = arith.constant 0 : i32
    %c0_i32_1 = arith.constant 0 : i32
    return %c0_i32, %c0_i32_0, %arg0 : i32, i32, i32
  }
  func.func @transform_1(%arg0: i32) -> (i32, i32) {
    %c0_i32 = arith.constant 0 : i32
    %c0_i32_0 = arith.constant 0 : i32
    %c0_i32_1 = arith.constant 0 : i32
    return %c0_i32, %c0_i32_0 : i32, i32
  }
  func.func @transform_2(%arg0: i32) -> (i32, i32) {
    %c0_i32 = arith.constant 0 : i32
    %c0_i32_0 = arith.constant 0 : i32
    %c0_i32_1 = arith.constant 0 : i32
    return %c0_i32, %c0_i32_0 : i32, i32
  }
  func.func @transform_3(%arg0: i32) -> (i32, i32) {
    %c0_i32 = arith.constant 0 : i32
    %c0_i32_0 = arith.constant 0 : i32
    return %c0_i32, %arg0 : i32, i32
  }
}

</mosaic_0001>

<llo_original>
// kernel: tpu_custom_call.1
$region0: #{tpu_custom_call.1}
  #allocation0 [shape = 'u32[]', space=smem, size = 0x4, offset = 0x4, fixed_abs, tag = 'smem constant byte address 0x4 - core index']
  #allocation1 [shape = 'u32[144,128]{1,0:T(1,128)}', space=vmem, size = 0x12000, scoped, tag = 'internal scratch']
  %s0 = inlined_call_operand.hbm [shape: s32[5,1,512], index: 0, kind: input, shape index: {}]
  %s1 = inlined_call_operand.hbm [shape: f32[8,160], index: 1, kind: input, shape index: {}]
  %s2 = inlined_call_operand.vmem [shape: f32[8,1], index: 2, kind: input, shape index: {}]
  %s3 = inlined_call_operand.hbm [shape: f32[8,512], index: 3, kind: output, shape index: {}]
  %s4 = sld [smem:[#allocation0]]
  $region53: #{tpu_custom_call.1} parent=0
    _
  %s6 = ssub.s32 1, %s4
  %s7 = scalar_select 0, %s6, %s4
  $region1: #{tpu_custom_call.1} parent=0
    #allocation2 [shape = 'u8[5120]{0}', space=vmem, size = 0x1400, scoped, tag = 'input window, operand 0']
    #allocation3 [shape = 's32[2]{0}', space=sflag, size = 0x8, scoped, tag = 'scoped memory for tpu_custom_call.1']
    #allocation4 [shape = 's32[2]{0}', space=sflag, size = 0x8, scoped, tag = 'scoped memory for tpu_custom_call.1']
    #allocation5 [shape = 'u8[8192]{0}', space=vmem, size = 0x2000, scoped, tag = 'input window, operand 1, single buffered']
    #allocation6 [shape = 's32[1]{0}', space=sflag, size = 0x4, scoped, tag = 'scoped memory for tpu_custom_call.1']
    #allocation7 [shape = 'u8[8192]{0}', space=vmem, size = 0x2000, scoped, tag = 'output window, operand 0']
    %8 = vsyncpa [#allocation3], 0
    %s9 = scalar_lea.sflag [#allocation3], 1
    %10 = vsyncpa %s9, 0
    %11 = vsyncpa [#allocation6], 0
    %12 = vsyncpa [#allocation4], 0
    %s13 = scalar_lea.sflag [#allocation4], 1
    %14 = vsyncpa %s13, 0
    loop: start=0, step=1, limit=6
    $region2: #{tpu_custom_call.1} parent=1 // loop_pre_header
      _
    $region3: #{tpu_custom_call.1} parent=1 // loop_header
      %s16 = sphi 0, %s20
      %p17 = scmp.ge.s32.totalorder %s16, 6
      %s26 = sphi 0, %s28
      %s29 = sphi 0, %s26
      %s30 = sphi 0, %s29
      %s46 = sphi 0, %s30
      %s50 = sphi 0, %s50
      %s52 = sphi 0, %s50
      %s53 = sphi 0, %s52
      %s67 = sphi 0, %s53
      %s71 = sphi 0, %s71
      %s73 = sphi 0, %s71
      %s74 = sphi 0, %s73
      %s88 = sphi 0, %s74
      %s94 = sphi 0, %s96
      %s97 = sphi 0, %s94
      %s98 = sphi 0, %s97
      %s114 = sphi 0, %s98
    $region4: #{tpu_custom_call.1} parent=1 // loop_header_branch
      %19 = sbr.rel (%p17) target = $region8
    $region5: #{tpu_custom_call.1} parent=1 // loop_body
      %s21 = ssub.s32 %s16, 1
      %s22 = ssub.s32 %s16, 2
      %s23 = sadd.s32 %s16, 1
      %s24 = ssub.s32 %s16, %s23
      %p25 = scmp.eq.s32.totalorder %s24, 0
      %s27 = sadd.s32 %s26, 1
      %s28 = scalar_select %p25, %s26, %s27
      %p31 = pneg %p25
      %p32 = scmp.eq.s32.totalorder %s16, 3
      %p33 = por %p31, %p32
      %p34 = scmp.ne.s32.totalorder %s26, %s29
      %p35 = scmp.eq.s32.totalorder %s16, 0
      %p36 = por %p34, %p35
      %p37 = scmp.ne.s32.totalorder %s26, %s29
      %p38 = scmp.eq.s32.totalorder %s21, 3
      %p39 = por %p37, %p38
      %p40 = scmp.ne.s32.totalorder %s29, %s30
      %p41 = scmp.eq.s32.totalorder %s21, 0
      %p42 = por %p40, %p41
      %p43 = scmp.ne.s32.totalorder %s29, %s30
      %p44 = scmp.eq.s32.totalorder %s22, 3
      %p45 = por %p43, %p44
      %p47 = scmp.ne.s32.totalorder %s30, %s46
      %p48 = scmp.eq.s32.totalorder %s22, 0
      %p49 = por %p47, %p48
      %s51 = sadd.s32 %s50, 1
      %p54 = scmp.eq.s32.totalorder %s16, 3
      %p55 = scmp.ne.s32.totalorder %s50, %s52
      %p56 = scmp.eq.s32.totalorder %s16, 0
      %p57 = por %p55, %p56
      %p58 = scmp.ne.s32.totalorder %s50, %s52
      %p59 = scmp.eq.s32.totalorder %s21, 3
      %p60 = por %p58, %p59
      %p61 = scmp.ne.s32.totalorder %s52, %s53
      %p62 = scmp.eq.s32.totalorder %s21, 0
      %p63 = por %p61, %p62
      %p64 = scmp.ne.s32.totalorder %s52, %s53
      %p65 = scmp.eq.s32.totalorder %s22, 3
      %p66 = por %p64, %p65
      %p68 = scmp.ne.s32.totalorder %s53, %s67
      %p69 = scmp.eq.s32.totalorder %s22, 0
      %p70 = por %p68, %p69
      %s72 = sadd.s32 %s71, 1
      %p75 = scmp.eq.s32.totalorder %s16, 3
      %p76 = scmp.ne.s32.totalorder %s71, %s73
      %p77 = scmp.eq.s32.totalorder %s16, 0
      %p78 = por %p76, %p77
      %p79 = scmp.ne.s32.totalorder %s71, %s73
      %p80 = scmp.eq.s32.totalorder %s21, 3
      %p81 = por %p79, %p80
      %p82 = scmp.ne.s32.totalorder %s73, %s74
      %p83 = scmp.eq.s32.totalorder %s21, 0
      %p84 = por %p82, %p83
      %p85 = scmp.ne.s32.totalorder %s73, %s74
      %p86 = scmp.eq.s32.totalorder %s22, 3
      %p87 = por %p85, %p86
      %p89 = scmp.ne.s32.totalorder %s74, %s88
      %p90 = scmp.eq.s32.totalorder %s22, 0
      %p91 = por %p89, %p90
      %s92 = ssub.s32 %s16, %s23
      %p93 = scmp.eq.s32.totalorder %s92, 0
      %s95 = sadd.s32 %s94, 1
      %s96 = scalar_select %p93, %s94, %s95
      %p99 = pneg %p93
      %p100 = scmp.eq.s32.totalorder %s16, 3
      %p101 = por %p99, %p100
      %p102 = scmp.ne.s32.totalorder %s94, %s97
      %p103 = scmp.eq.s32.totalorder %s16, 0
      %p104 = por %p102, %p103
      %p105 = scmp.ne.s32.totalorder %s94, %s97
      %p106 = scmp.eq.s32.totalorder %s21, 3
      %p107 = por %p105, %p106
      %p108 = scmp.ne.s32.totalorder %s97, %s98
      %p109 = scmp.eq.s32.totalorder %s21, 0
      %p110 = por %p108, %p109
      %p111 = scmp.ne.s32.totalorder %s97, %s98
      %p112 = scmp.eq.s32.totalorder %s22, 3
      %p113 = por %p111, %p112
      %p115 = scmp.ne.s32.totalorder %s98, %s114
      %p116 = scmp.eq.s32.totalorder %s22, 0
      %p117 = por %p115, %p116
      %p118 = scmp.le.s32.totalorder 1, %s16
      %p119 = scmp.lt.s32.totalorder %s16, 5
      %p120 = pnand %p118, %p119
      %p121 = pneg %p120
      // Predicated region
      $region9: #{tpu_custom_call.1} parent=5 // pred_check
        _
      $region10: #{tpu_custom_call.1} parent=5 // pred_check_branch
        %123 = sbr.rel (%p120) target = $region12
      $region11: #{tpu_custom_call.1} parent=5 // pred_region
        %s124 = ssub.s32 %s16, 1
        // Predicated region
        $region13: #{tpu_custom_call.1} parent=11 // pred_check
          %p125 = pneg %p63
        $region14: #{tpu_custom_call.1} parent=11 // pred_check_branch
          %127 = sbr.rel (%p125) target = $region16
        $region15: #{tpu_custom_call.1} parent=11 // pred_region
          %s129 = ssub.s32 256, 256
          %130 = vsyncadd [#allocation6], %s129
          %s132 = sshll.u32 [#allocation5], 4
          %s133 = int_to_ptr.vmem [resolvable:$true] %s132
          %135 = dma.hbm_to_vmem [thread:$0]  %s1, 256, %s133, [#allocation6]
        $region16: #{tpu_custom_call.1} parent=11 // pred_fallthru
          _
        // Predicated region
        $region17: #{tpu_custom_call.1} parent=11 // pred_check
          %p136 = pneg %p84
        $region18: #{tpu_custom_call.1} parent=11 // pred_check_branch
          %138 = sbr.rel (%p136) target = $region20
        $region19: #{tpu_custom_call.1} parent=11 // pred_region
          _
        $region20: #{tpu_custom_call.1} parent=11 // pred_fallthru
          _
      $region12: #{tpu_custom_call.1} parent=5 // pred_fallthru
        _
      %p139 = scmp.lt.s32.totalorder %s16, 4
      // Predicated region
      $region21: #{tpu_custom_call.1} parent=5 // pred_check
        %p140 = pneg %p139
      $region22: #{tpu_custom_call.1} parent=5 // pred_check_branch
        %142 = sbr.rel (%p140) target = $region24
      $region23: #{tpu_custom_call.1} parent=5 // pred_region
        // Predicated region
        $region25: #{tpu_custom_call.1} parent=23 // pred_check
          %p143 = pneg %p36
        $region26: #{tpu_custom_call.1} parent=23 // pred_check_branch
          %145 = sbr.rel (%p143) target = $region28
        $region27: #{tpu_custom_call.1} parent=23 // pred_region
          %s146 = sand.u32 %s26, 1
          %s147 = scalar_lea.sflag [#allocation3], %s146
          %s148 = sand.u32 %s26, 1
          %s149 = smul.addr %s148, 5
          %s150 = scalar_lea.vmem [#allocation2], %s149
          %s152 = ssub.s32 80, 80
          %153 = vsyncadd %s147, %s152
          %s154 = smul.addr %s16, 16
          %s155 = scalar_lea.hbm %s0, %s154
          %s156 = sshll.u32 %s150, 4
          %s157 = int_to_ptr.vmem [resolvable:$true] %s156
          %162 = dma.hbm_to_vmem [thread:$0]  %s155, 80, %s157, %s147, 64, 16, 1
        $region28: #{tpu_custom_call.1} parent=23 // pred_fallthru
          _
      $region24: #{tpu_custom_call.1} parent=5 // pred_fallthru
        _
      %p163 = scmp.le.s32.totalorder 1, %s16
      %p164 = scmp.lt.s32.totalorder %s16, 5
      %p165 = pnand %p163, %p164
      %p166 = pneg %p165
      // Predicated region
      $region29: #{tpu_custom_call.1} parent=5 // pred_check
        _
      $region30: #{tpu_custom_call.1} parent=5 // pred_check_branch
        %168 = sbr.rel (%p165) target = $region32
      $region31: #{tpu_custom_call.1} parent=5 // pred_region
        %s169 = ssub.s32 %s16, 1
        %s170 = sand.u32 %s29, 1
        %s171 = scalar_lea.sflag [#allocation3], %s170
        %s172 = sand.u32 %s29, 1
        %s173 = smul.addr %s172, 5
        %s174 = scalar_lea.vmem [#allocation2], %s173
        // Predicated region
        $region33: #{tpu_custom_call.1} parent=31 // pred_check
          %p175 = pneg %p42
        $region34: #{tpu_custom_call.1} parent=31 // pred_check_branch
          %177 = sbr.rel (%p175) target = $region36
        $region35: #{tpu_custom_call.1} parent=31 // pred_region
          %178 = dma.done %s171, 80
        $region36: #{tpu_custom_call.1} parent=31 // pred_fallthru
          _
        // Predicated region
        $region37: #{tpu_custom_call.1} parent=31 // pred_check
          %p179 = pneg %p63
        $region38: #{tpu_custom_call.1} parent=31 // pred_check_branch
          %181 = sbr.rel (%p179) target = $region40
        $region39: #{tpu_custom_call.1} parent=31 // pred_region
          %182 = dma.done [#allocation6], 256
        $region40: #{tpu_custom_call.1} parent=31 // pred_fallthru
          _
        %s183 = sand.u32 %s29, 1
        %s184 = scalar_lea.sflag [#allocation3], %s183
        %s185 = sand.u32 %s29, 1
        %s186 = smul.addr %s185, 5
        %s187 = scalar_lea.vmem [#allocation2], %s186
        %p188 = pneg %p42
        %p189 = pneg %p39
        %p190 = pneg %p63
        %p191 = pneg %p60
        %p192 = pneg %p84
        %p193 = pneg %p81
        %p194 = pneg %p110
        %p195 = pneg %p107
        %s196 = sand.u32 %s97, 1
        %s197 = scalar_lea.sflag [#allocation4], %s196
        %s198 = sand.u32 %s97, 1
        %s199 = smul.addr %s198, 8
        %s200 = scalar_lea.vmem [#allocation7], %s199
        %v201 = vlaneseq
        %v202 = vshrl.u32 %v201, 7
        %v203 = vadd.s32 %v202, 8
        %v204 = vadd.s32 %v202, 16
        %v205 = vadd.s32 %v202, 24
        %v206 = vld [vmem:[%s174] sm:$0x1]
        %v207 = vld [vmem:[%s174 + $0x1] sm:$0x1]
        %v208 = vld [vmem:[%s174 + $0x2] sm:$0x1]
        %v209 = vld [vmem:[%s174 + $0x3] sm:$0x1]
        %v210 = vld [vmem:[%s174 + $0x4] sm:$0x1]
        %v211 = vlaneseq
        %v212 = vshrl.u32 %v211, 7
        %v213 = vsub.s32 0, %v212
        %v214 = vrot.slane %v206, %v213
        %v215 = vlaneseq
        %v216 = vshrl.u32 %v215, 7
        %v217 = vsub.s32 0, %v216
        %v218 = vrot.slane %v207, %v217
        %v219 = vlaneseq
        %v220 = vshrl.u32 %v219, 7
        %v221 = vsub.s32 0, %v220
        %v222 = vrot.slane %v208, %v221
        %v223 = vlaneseq
        %v224 = vshrl.u32 %v223, 7
        %v225 = vsub.s32 0, %v224
        %v226 = vrot.slane %v209, %v225
        %v227 = vlaneseq
        %v228 = vshrl.u32 %v227, 7
        %v229 = vsub.s32 0, %v228
        %v230 = vrot.slane %v210, %v229
        %vm231 = vcmp.eq.s32.totalorder %v202, %v214
        %vm232 = vcmp.eq.s32.totalorder %v203, %v214
        %vm233 = vcmp.eq.s32.totalorder %v204, %v214
        %vm234 = vcmp.eq.s32.totalorder %v205, %v214
        %vm235 = vcmp.eq.s32.totalorder %v202, %v218
        %vm236 = vcmp.eq.s32.totalorder %v203, %v218
        %vm237 = vcmp.eq.s32.totalorder %v204, %v218
        %vm238 = vcmp.eq.s32.totalorder %v205, %v218
        %vm239 = vcmp.eq.s32.totalorder %v202, %v222
        %vm240 = vcmp.eq.s32.totalorder %v203, %v222
        %vm241 = vcmp.eq.s32.totalorder %v204, %v222
        %vm242 = vcmp.eq.s32.totalorder %v205, %v222
        %vm243 = vcmp.eq.s32.totalorder %v202, %v226
        %vm244 = vcmp.eq.s32.totalorder %v203, %v226
        %vm245 = vcmp.eq.s32.totalorder %v204, %v226
        %vm246 = vcmp.eq.s32.totalorder %v205, %v226
        %vm247 = vcmp.eq.s32.totalorder %v202, %v230
        %vm248 = vcmp.eq.s32.totalorder %v203, %v230
        %vm249 = vcmp.eq.s32.totalorder %v204, %v230
        %vm250 = vcmp.eq.s32.totalorder %v205, %v230
        %v251 = vsel %vm231, 1, 0
        %v252 = vsel %vm232, 1, 0
        %v253 = vsel %vm233, 1, 0
        %v254 = vsel %vm234, 1, 0
        %v255 = vsel %vm235, 1, 0
        %v256 = vsel %vm236, 1, 0
        %v257 = vsel %vm237, 1, 0
        %v258 = vsel %vm238, 1, 0
        %v259 = vsel %vm239, 1, 0
        %v260 = vsel %vm240, 1, 0
        %v261 = vsel %vm241, 1, 0
        %v262 = vsel %vm242, 1, 0
        %v263 = vsel %vm243, 1, 0
        %v264 = vsel %vm244, 1, 0
        %v265 = vsel %vm245, 1, 0
        %v266 = vsel %vm246, 1, 0
        %v267 = vsel %vm247, 1, 0
        %v268 = vsel %vm248, 1, 0
        %v269 = vsel %vm249, 1, 0
        %v270 = vsel %vm250, 1, 0
        %v271 = vcvt.s32.f32 %v251
        %v272 = vcvt.s32.f32 %v252
        %v273 = vcvt.s32.f32 %v253
        %v274 = vcvt.s32.f32 %v254
        %v275 = vcvt.s32.f32 %v255
        %v276 = vcvt.s32.f32 %v256
        %v277 = vcvt.s32.f32 %v257
        %v278 = vcvt.s32.f32 %v258
        %v279 = vcvt.s32.f32 %v259
        %v280 = vcvt.s32.f32 %v260
        %v281 = vcvt.s32.f32 %v261
        %v282 = vcvt.s32.f32 %v262
        %v283 = vcvt.s32.f32 %v263
        %v284 = vcvt.s32.f32 %v264
        %v285 = vcvt.s32.f32 %v265
        %v286 = vcvt.s32.f32 %v266
        %v287 = vcvt.s32.f32 %v267
        %v288 = vcvt.s32.f32 %v268
        %v289 = vcvt.s32.f32 %v269
        %v290 = vcvt.s32.f32 %v270
        %v291 = vld [vmem:[#allocation5] sm:$0xff]
        %v292 = vld [vmem:[#allocation5 + $0x8] sm:$0xff]
        %v293 = vld [vmem:[%s2] sm:$0xff]
        %295 = vset.pattern.permute.xlu0 0
        %296 = vperm.xlu0 %295, %v293
        %v297 = vpop.permute.xlu0 %296
        %vm299 = vcmask 261120
        %v301 = vsel %vm299, %v292, 0
        %303 = vmatprep.subr.mxu0 0.0
        %304 = vmatpush1.msra.mxu0 %v271
        %305 = vmatprep.subr.mxu0 0.0
        %306 = vmatpush1.msra.mxu0 %v272
        %307 = vmatprep.subr.mxu0 0.0
        %308 = vmatpush1.msra.mxu0 %v273
        %309 = vmatprep.subr.mxu0 0.0
        %310 = vmatpush1.msra.mxu0 %v274
        %311 = vmatprep.subr.mxu0 0.0
        %312 = vmatpush1.msra.mxu0 %v275
        %313 = vmatprep.subr.mxu0 0.0
        %314 = vmatpush1.msra.mxu0 %v276
        %315 = vmatprep.subr.mxu0 0.0
        %316 = vmatpush1.msra.mxu0 %v277
        %317 = vmatprep.subr.mxu0 0.0
        %318 = vmatpush1.msra.mxu0 %v278
        %319 = vmatprep.subr.mxu0 0.0
        %320 = vmatpush1.msra.mxu0 %v279
        %321 = vmatprep.subr.mxu0 0.0
        %322 = vmatpush1.msra.mxu0 %v280
        %323 = vmatprep.subr.mxu0 0.0
        %324 = vmatpush1.msra.mxu0 %v281
        %325 = vmatprep.subr.mxu0 0.0
        %326 = vmatpush1.msra.mxu0 %v282
        %327 = vmatprep.subr.mxu0 0.0
        %328 = vmatpush1.msra.mxu0 %v283
        %329 = vmatprep.subr.mxu0 0.0
        %330 = vmatpush1.msra.mxu0 %v284
        %331 = vmatprep.subr.mxu0 0.0
        %332 = vmatpush1.msra.mxu0 %v285
        %333 = vmatprep.subr.mxu0 0.0
        %334 = vmatpush1.msra.mxu0 %v286
        %335 = vmatprep.subr.mxu0 0.0
        %336 = vmatpush1.msra.mxu0 %v287
        %337 = vmatprep.subr.mxu0 0.0
        %338 = vmatpush1.msra.mxu0 %v288
        %339 = vmatprep.subr.mxu0 0.0
        %340 = vmatpush1.msra.mxu0 %v289
        %341 = vmatprep.subr.mxu0 0.0
        %342 = vmatpush1.msra.mxu0 %v290
        %343 = vmatprep.subr.mxu0 0.0
        %344 = vmatpush1.msra.mxu0 0.0
        %345 = vmatprep.subr.mxu0 0.0
        %346 = vmatpush1.msra.mxu0 0.0
        %347 = vmatprep.subr.mxu0 0.0
        %348 = vmatpush1.msra.mxu0 0.0
        %349 = vmatprep.subr.mxu0 0.0
        %350 = vmatpush1.msra.mxu0 0.0
        %351 = vmatprep.subr.mxu0 0.0
        %352 = vmatpush1.msra.mxu0 0.0
        %353 = vmatprep.subr.mxu0 0.0
        %354 = vmatpush1.msra.mxu0 0.0
        %355 = vmatprep.subr.mxu0 0.0
        %356 = vmatpush1.msra.mxu0 0.0
        %357 = vmatprep.subr.mxu0 0.0
        %358 = vmatpush1.msra.mxu0 0.0
        %359 = vmatprep.subr.mxu0 0.0
        %360 = vmatpush1.msra.mxu0 0.0
        %361 = vmatprep.subr.mxu0 0.0
        %362 = vmatpush1.msra.mxu0 0.0
        %363 = vmatprep.subr.mxu0 0.0
        %364 = vmatpush1.msra.mxu0 0.0
        %365 = vmatprep.subr.mxu0 0.0
        %366 = vmatpush1.msra.mxu0 0.0
        %367 = vmatprep.mubr.f32.mxu0 %v301
        %368 = vmatmul.mubr.f32.gmra.mrb[0].mxu0 %v291
        %v369 = vpop.f32.mrb[0].mxu0
        %v370 = vadd.f32 %v297, %v369
        %v371 = vpop.f32.mrb[0].mxu0
        %372 = vdwg.mxu0
        %373 = vst [vmem:[%s200] sm:$0xff] %v370
        %s374 = sand.u32 %s97, 1
        %s375 = scalar_lea.sflag [#allocation4], %s374
        %s376 = sand.u32 %s97, 1
        %s377 = smul.addr %s376, 8
        %s378 = scalar_lea.vmem [#allocation7], %s377
        // Predicated region
        $region41: #{tpu_custom_call.1} parent=31 // pred_check
          %p379 = pneg %p107
        $region42: #{tpu_custom_call.1} parent=31 // pred_check_branch
          %381 = sbr.rel (%p379) target = $region44
        $region43: #{tpu_custom_call.1} parent=31 // pred_region
          %s383 = ssub.s32 128, 128
          %384 = vsyncadd %s375, %s383
          %s385 = smul.addr %s21, 128
          %s386 = scalar_lea.hbm %s3, %s385
          %s388 = sshll.u32 %s378, 4
          %s389 = int_to_ptr.vmem [resolvable:$true] %s388
          %391 = dma.vmem_to_hbm [thread:$0]  %s389, 128, %s386, %s375
        $region44: #{tpu_custom_call.1} parent=31 // pred_fallthru
          _
      $region32: #{tpu_custom_call.1} parent=5 // pred_fallthru
        _
      %p392 = scmp.le.s32.totalorder 2, %s16
      // Predicated region
      $region45: #{tpu_custom_call.1} parent=5 // pred_check
        %p393 = pneg %p392
      $region46: #{tpu_custom_call.1} parent=5 // pred_check_branch
        %395 = sbr.rel (%p393) target = $region48
      $region47: #{tpu_custom_call.1} parent=5 // pred_region
        %s396 = ssub.s32 %s16, 2
        // Predicated region
        $region49: #{tpu_custom_call.1} parent=47 // pred_check
          %p397 = pneg %p113
        $region50: #{tpu_custom_call.1} parent=47 // pred_check_branch
          %399 = sbr.rel (%p397) target = $region52
        $region51: #{tpu_custom_call.1} parent=47 // pred_region
          %s400 = sand.u32 %s98, 1
          %s401 = scalar_lea.sflag [#allocation4], %s400
          %s402 = sand.u32 %s98, 1
          %s403 = smul.addr %s402, 8
          %s404 = scalar_lea.vmem [#allocation7], %s403
          %405 = dma.done %s401, 128
        $region52: #{tpu_custom_call.1} parent=47 // pred_fallthru
          _
      $region48: #{tpu_custom_call.1} parent=5 // pred_fallthru
        _
    $region6: #{tpu_custom_call.1} parent=1 // loop_footer
      %s20 = sadd.s32 1, %s16
    $region7: #{tpu_custom_call.1} parent=1 // loop_footer_branch
      %15 = sbr.rel target = $region3
    $region8: #{tpu_custom_call.1} parent=1 // loop_exit
      _
    %406 = vsyncpa [#allocation3], 1
    %s407 = scalar_lea.sflag [#allocation3], 1
    %408 = vsyncpa %s407, 1
    %409 = vsyncpa [#allocation6], 1
    %410 = vsyncpa [#allocation4], 1
    %s411 = scalar_lea.sflag [#allocation4], 1
    %412 = vsyncpa %s411, 1

</llo_original>
